<compile_context>
chip_gen: v7x
topology: tpu7x:2x2x1
jax: 0.10.0
libtpu: 0.0.40
codegen_flags: <defaults>
</compile_context>

<pallas_src>
import functools

import jax
import jax.numpy as jnp
from jax.experimental import pallas as pl
from jax.experimental.pallas import tpu as pltpu


_SKIN_LOCAL_PARTS = ['eye', 'eye_', 'mouth', 'nose', 'cheek', 'cheek_',
                     'eyebrow', 'eyebrow_', 'uppernose', 'forehead',
                     'sidemouth', 'sidemouth_']
_WARP_LOCAL_PARTS = ['skin_warp', 'eyebrow_his', 'eyebrow__his', 'lip_his']
_NON_BG = ['bg']


def _hist_loss_kernel(mode, rows, tile_rows, ragged,
                      inp_ref, tgt_ref, ref_ref, msrc_ref, mtar_ref,
                      *out_refs):
    """mode is a static python string: 'bg' or 'local'.

    Blocks:
      images      : (3, tile_rows, 128)   native input dtype / img_dtype output
      masks       : (tile_rows, 128)      native dtype, broadcast over channel
      loss partial: (1, 8, 128) f32       per-tile sublane-partial sum
    """
    if mode == 'bg':
        tgt_m_ref, ref_m_ref, inp_m_ref, part_ref = out_refs
        match_ref = None
    else:
        tgt_m_ref, ref_m_ref, inp_m_ref, match_ref, part_ref = out_refs

    f32 = jnp.float32
    inv255 = f32(1.0 / 255.0)

    def de_norm(x):
        return jnp.clip((x + 1.0) * 0.5, 0.0, 1.0)

    # Masks: native dtype -> f32, /255; channel broadcast happens via [None].
    msrc = msrc_ref[...].astype(f32) * inv255              # (tile_rows, 128)
    mtar = mtar_ref[...].astype(f32) * inv255

    # Images: native dtype -> f32 per tile (no wrapper-side cast pass).
    tgt255 = de_norm(tgt_ref[...].astype(f32)) * 255.0            # target_data
    inp255 = jnp.clip(inp_ref[...].astype(f32), 0.0, 1.0) * 255.0  # input_data
    ref255 = de_norm(ref_ref[...].astype(f32)) * 255.0             # ref

    input_masked = inp255 * msrc[None]
    target_masked = tgt255 * mtar[None]
    ref_masked = ref255 * msrc[None]

    # Stores: f32 math, cast to the (narrow) output dtype only at the store.
    tgt_m_ref[...] = (target_masked * inv255).astype(tgt_m_ref.dtype)
    ref_m_ref[...] = (ref_masked * inv255).astype(ref_m_ref.dtype)
    inp_m_ref[...] = (input_masked * inv255).astype(inp_m_ref.dtype)

    if mode == 'bg':
        input_match = ref_masked               # match image == ref_m (aliased)
    else:                                      # skin-local / warp-local parts
        input_match = tgt255 * msrc[None]
        match_ref[...] = (input_match * inv255).astype(match_ref.dtype)

    diff = (input_masked - input_match) * inv255
    contrib = diff * diff if mode == 'bg' else jnp.abs(diff)   # MSE vs L1 terms

    if ragged:
        # cdiv grid: mask out rows past the real image in the last tile.
        r = pl.program_id(0)
        row_idx = jax.lax.broadcasted_iota(jnp.int32, (tile_rows, 128), 0)
        valid = (r * tile_rows + row_idx) < rows
        contrib = jnp.where(valid[None], contrib, 0.0)

    # Sublane-partial reduction: pure vreg adds on the VPU, no XLU reduce.
    n_ch = contrib.shape[0]
    part_ref[0] = contrib.reshape(n_ch * tile_rows // 8, 8, 128).sum(axis=0)


def _pick_tile_rows(rows, max_rows=1024):
    """Tile size in 128-lane rows.

    Multiples of 16 keep any >=16-bit dtype sublane-tile aligned; capped at
    rows//2 so the (parallel) grid has >=2 balanced steps for v7x megacore,
    and at 1024 so the double-buffered working set stays ~16 MiB (safe for
    v7x's 64 MiB VMEM). Prefers an exact divisor; otherwise the wrapper uses a
    cdiv grid and the kernel masks the ragged tail.
    """
    if rows <= 16:
        return 16
    cap = min(max_rows, max(16, (rows // 2) // 16 * 16))
    for t in range(cap, 15, -16):
        if rows % t == 0:
            return t
    return cap


def histogram_loss_forward(vggnet, input_data, target_data, target_data_eye,
                           mask_src, mask_tar, index, ref, part,
                           img_dtype=jnp.bfloat16):
    """Mirrors HistogramLoss.forward (use_vgg=False paths).

    vggnet / target_data_eye / index are unused by the executed paths, same as
    the torch code. Returns (imgs, loss); imgs is a list of 4 (1,3,H,W) arrays
    (dtype img_dtype), loss is a f32 scalar.
    """
    if part in _NON_BG:
        mode = 'bg'
    elif part in _SKIN_LOCAL_PARTS or part in _WARP_LOCAL_PARTS:
        mode = 'local'
    else:
        # TODO(synk): histogram_matching branch (data-dependent numpy histogram
        # / transfer-table loops) has no clean Pallas equivalent.
        raise NotImplementedError(
            "histogram_matching path not implemented in the Pallas kernel")

    N, C, H, W = input_data.shape
    assert N == 1, "module semantics (squeeze/unsqueeze) assume batch size 1"
    assert C == 3, "module assumes 3-channel images"
    n_pix = H * W
    # TODO(synk): pad the lane axis for H*W not a multiple of 128 if ever needed.
    assert n_pix % 128 == 0, "H*W must be a multiple of 128 for lane-dense layout"
    rows = n_pix // 128
    tile_rows = _pick_tile_rows(rows)
    n_tiles = pl.cdiv(rows, tile_rows)
    ragged = (rows % tile_rows) != 0

    # Lane-dense slabs; reshapes are metadata only, dtypes stay native
    # (no wrapper-side up-cast pass over HBM).
    inp = input_data.reshape(C, rows, 128)
    tgt = target_data.reshape(C, rows, 128)
    rff = ref.reshape(C, rows, 128)
    msrc = mask_src.reshape(rows, 128)
    mtar = mask_tar.reshape(rows, 128)

    img_spec = pl.BlockSpec((C, tile_rows, 128), lambda r: (0, r, 0))
    mask_spec = pl.BlockSpec((tile_rows, 128), lambda r: (r, 0))
    part_spec = pl.BlockSpec((1, 8, 128), lambda r: (r, 0, 0))

    img_shape = jax.ShapeDtypeStruct((C, rows, 128), img_dtype)
    part_shape = jax.ShapeDtypeStruct((n_tiles, 8, 128), jnp.float32)

    n_img_out = 3 if mode == 'bg' else 4     # 'bg': skip redundant match writeback
    out_shape = tuple([img_shape] * n_img_out) + (part_shape,)
    out_specs = tuple([img_spec] * n_img_out) + (part_spec,)

    outs = pl.pallas_call(
        functools.partial(_hist_loss_kernel, mode, rows, tile_rows, ragged),
        out_shape=out_shape,
        grid=(n_tiles,),
        in_specs=[img_spec, img_spec, img_spec, mask_spec, mask_spec],
        out_specs=out_specs,
        compiler_params=pltpu.CompilerParams(
            dimension_semantics=("parallel",),
            vmem_limit_bytes=48 * 1024 * 1024),
    )(inp, tgt, rff, msrc, mtar)

    if mode == 'bg':
        tgt_m, ref_m, inp_m, partial = outs
        match = ref_m                         # input_match == ref_masked in 'bg'
    else:
        tgt_m, ref_m, inp_m, match, partial = outs

    loss = jnp.sum(partial) / jnp.float32(C * H * W)

    to_img = lambda x: x.reshape(1, C, H, W)  # back to NCHW with unsqueeze(0)
    imgs = [to_img(tgt_m), to_img(ref_m), to_img(inp_m), to_img(match)]
    return imgs, loss


def _reference(input_data, target_data, mask_src, mask_tar, ref, part):
    """Pure-JAX f32 reference of the torch forward (for sanity checking)."""
    up = lambda a: a.astype(jnp.float32)
    de_norm = lambda x: jnp.clip((x + 1.0) / 2.0, 0.0, 1.0)
    C, H, W = 3, input_data.shape[2], input_data.shape[3]
    tgt = (de_norm(up(target_data)) * 255.0).reshape(C, H, W)
    inp = (jnp.clip(up(input_data), 0.0, 1.0) * 255.0).reshape(C, H, W)
    rff = (de_norm(up(ref)) * 255.0).reshape(C, H, W)
    msrc = jnp.broadcast_to(up(mask_src).reshape(1, H, W) / 255.0, (C, H, W))
    mtar = jnp.broadcast_to(up(mask_tar).reshape(1, H, W) / 255.0, (C, H, W))
    input_masked = inp * msrc
    target_masked = tgt * mtar
    ref_masked = rff * msrc
    if part == 'bg':
        input_match = ref_masked
        loss = jnp.mean((input_masked / 255.0 - input_match / 255.0) ** 2)
    else:
        input_match = tgt * msrc
        loss = jnp.mean(jnp.abs(input_masked / 255.0 - input_match / 255.0))
    imgs = [x / 255.0 for x in (target_masked, ref_masked, input_masked, input_match)]
    return imgs, loss


def _make_inputs(key, H, W):
    k1, k2, k3, k4, k5 = jax.random.split(key, 5)
    input_data = jax.random.uniform(k1, (1, 3, H, W), minval=-0.2, maxval=1.2)
    target_data = jax.random.uniform(k2, (1, 3, H, W), minval=-1.0, maxval=1.0)
    ref = jax.random.uniform(k3, (1, 3, H, W), minval=-1.0, maxval=1.0)
    # Masks are binary 0/255 -> pass them narrow (bf16) and up-cast in-kernel.
    mask_src = (jax.random.uniform(k4, (1, 1, H, W)) > 0.5).astype(jnp.bfloat16) * 255.0
    mask_tar = (jax.random.uniform(k5, (1, 1, H, W)) > 0.5).astype(jnp.bfloat16) * 255.0
    return input_data, target_data, ref, mask_src, mask_tar


if __name__ == "__main__":
    key = jax.random.PRNGKey(0)
    k_main, k_ragged = jax.random.split(key)

    cases = [
        (64, 64, ('eye', 'skin_warp', 'bg'), k_main),    # divisible tiles, 2 grid steps
        (40, 48, ('bg', 'eye'), k_ragged),               # ragged tail (rows=15, tile=16)
    ]

    for H, W, parts, k in cases:
        input_data, target_data, ref, mask_src, mask_tar = _make_inputs(k, H, W)
        target_data_eye = None   # unused by the executed path
        index = None             # unused (only needed by histogram_matching)

        for part in parts:
            imgs, loss = histogram_loss_forward(None, input_data, target_data,
                                                target_data_eye, mask_src,
                                                mask_tar, index, ref, part)
            jax.block_until_ready(loss)
            ref_imgs, ref_loss = _reference(input_data, target_data, mask_src,
                                            mask_tar, ref, part)
            assert abs(float(loss) - float(ref_loss)) < 1e-4, (H, part, loss, ref_loss)
            for a, b in zip(imgs, ref_imgs):
                err = float(jnp.max(jnp.abs(a[0].astype(jnp.float32) - b)))
                assert err < 5e-3, (H, part, err)   # bf16 image outputs

    print("KERNEL_OK")
</pallas_src>

<mosaic_0001>
module attributes {stable_mosaic.version = 11 : i64} {
  func.func @_hist_loss_kernel(%arg0: i32, %arg1: memref<3x16x128xf32, #tpu.memory_space<vmem>>, %arg2: memref<3x16x128xf32, #tpu.memory_space<vmem>>, %arg3: memref<3x16x128xf32, #tpu.memory_space<vmem>>, %arg4: memref<16x128xbf16, #tpu.memory_space<vmem>>, %arg5: memref<16x128xbf16, #tpu.memory_space<vmem>>, %arg6: memref<3x16x128xbf16, #tpu.memory_space<vmem>>, %arg7: memref<3x16x128xbf16, #tpu.memory_space<vmem>>, %arg8: memref<3x16x128xbf16, #tpu.memory_space<vmem>>, %arg9: memref<3x16x128xbf16, #tpu.memory_space<vmem>>, %arg10: memref<1x8x128xf32, #tpu.memory_space<vmem>>) attributes {dimension_semantics = [#tpu.dimension_semantics<parallel>], iteration_bounds = array<i64: 2>, scalar_prefetch = 0 : i64, scratch_operands = 0 : i64, tpu.core_type = #tpu.core_type<tc>, window_params = [{transform_indices = @transform_0, window_bounds = array<i64: 3, 16, 128>}, {transform_indices = @transform_1, window_bounds = array<i64: 3, 16, 128>}, {transform_indices = @transform_2, window_bounds = array<i64: 3, 16, 128>}, {transform_indices = @transform_3, window_bounds = array<i64: 16, 128>}, {transform_indices = @transform_4, window_bounds = array<i64: 16, 128>}, {transform_indices = @transform_5, window_bounds = array<i64: 3, 16, 128>}, {transform_indices = @transform_6, window_bounds = array<i64: 3, 16, 128>}, {transform_indices = @transform_7, window_bounds = array<i64: 3, 16, 128>}, {transform_indices = @transform_8, window_bounds = array<i64: 3, 16, 128>}, {transform_indices = @transform_9, window_bounds = array<i64: 1, 8, 128>}]} {
    %c0 = arith.constant 0 : index
    %c0_0 = arith.constant 0 : index
    %0 = vector.load %arg4[%c0, %c0_0] : memref<16x128xbf16, #tpu.memory_space<vmem>>, vector<16x128xbf16>
    %1 = arith.extf %0 : vector<16x128xbf16> to vector<16x128xf32>
    %cst = arith.constant 0.00392156886 : f32
    %2 = vector.broadcast %cst : f32 to vector<16x128xf32>
    %3 = arith.mulf %1, %2 : vector<16x128xf32>
    %c0_1 = arith.constant 0 : index
    %c0_2 = arith.constant 0 : index
    %4 = vector.load %arg5[%c0_1, %c0_2] : memref<16x128xbf16, #tpu.memory_space<vmem>>, vector<16x128xbf16>
    %5 = arith.extf %4 : vector<16x128xbf16> to vector<16x128xf32>
    %cst_3 = arith.constant 0.00392156886 : f32
    %6 = vector.broadcast %cst_3 : f32 to vector<16x128xf32>
    %7 = arith.mulf %5, %6 : vector<16x128xf32>
    %c0_4 = arith.constant 0 : index
    %c0_5 = arith.constant 0 : index
    %c0_6 = arith.constant 0 : index
    %8 = vector.load %arg2[%c0_4, %c0_5, %c0_6] : memref<3x16x128xf32, #tpu.memory_space<vmem>>, vector<3x16x128xf32>
    %cst_7 = arith.constant 1.000000e+00 : f32
    %9 = vector.broadcast %cst_7 : f32 to vector<3x16x128xf32>
    %10 = arith.addf %8, %9 : vector<3x16x128xf32>
    %cst_8 = arith.constant 5.000000e-01 : f32
    %11 = vector.broadcast %cst_8 : f32 to vector<3x16x128xf32>
    %12 = arith.mulf %10, %11 : vector<3x16x128xf32>
    %cst_9 = arith.constant 0.000000e+00 : f32
    %cst_10 = arith.constant 1.000000e+00 : f32
    %13 = vector.broadcast %cst_9 : f32 to vector<3x16x128xf32>
    %14 = arith.maximumf %13, %12 : vector<3x16x128xf32>
    %15 = vector.broadcast %cst_10 : f32 to vector<3x16x128xf32>
    %16 = arith.minimumf %15, %14 : vector<3x16x128xf32>
    %cst_11 = arith.constant 2.550000e+02 : f32
    %17 = vector.broadcast %cst_11 : f32 to vector<3x16x128xf32>
    %18 = arith.mulf %16, %17 : vector<3x16x128xf32>
    %c0_12 = arith.constant 0 : index
    %c0_13 = arith.constant 0 : index
    %c0_14 = arith.constant 0 : index
    %19 = vector.load %arg1[%c0_12, %c0_13, %c0_14] : memref<3x16x128xf32, #tpu.memory_space<vmem>>, vector<3x16x128xf32>
    %cst_15 = arith.constant 0.000000e+00 : f32
    %cst_16 = arith.constant 1.000000e+00 : f32
    %20 = vector.broadcast %cst_15 : f32 to vector<3x16x128xf32>
    %21 = arith.maximumf %20, %19 : vector<3x16x128xf32>
    %22 = vector.broadcast %cst_16 : f32 to vector<3x16x128xf32>
    %23 = arith.minimumf %22, %21 : vector<3x16x128xf32>
    %cst_17 = arith.constant 2.550000e+02 : f32
    %24 = vector.broadcast %cst_17 : f32 to vector<3x16x128xf32>
    %25 = arith.mulf %23, %24 : vector<3x16x128xf32>
    %c0_18 = arith.constant 0 : index
    %c0_19 = arith.constant 0 : index
    %c0_20 = arith.constant 0 : index
    %26 = vector.load %arg3[%c0_18, %c0_19, %c0_20] : memref<3x16x128xf32, #tpu.memory_space<vmem>>, vector<3x16x128xf32>
    %cst_21 = arith.constant 1.000000e+00 : f32
    %27 = vector.broadcast %cst_21 : f32 to vector<3x16x128xf32>
    %28 = arith.addf %26, %27 : vector<3x16x128xf32>
    %cst_22 = arith.constant 5.000000e-01 : f32
    %29 = vector.broadcast %cst_22 : f32 to vector<3x16x128xf32>
    %30 = arith.mulf %28, %29 : vector<3x16x128xf32>
    %cst_23 = arith.constant 0.000000e+00 : f32
    %cst_24 = arith.constant 1.000000e+00 : f32
    %31 = vector.broadcast %cst_23 : f32 to vector<3x16x128xf32>
    %32 = arith.maximumf %31, %30 : vector<3x16x128xf32>
    %33 = vector.broadcast %cst_24 : f32 to vector<3x16x128xf32>
    %34 = arith.minimumf %33, %32 : vector<3x16x128xf32>
    %cst_25 = arith.constant 2.550000e+02 : f32
    %35 = vector.broadcast %cst_25 : f32 to vector<3x16x128xf32>
    %36 = arith.mulf %34, %35 : vector<3x16x128xf32>
    %37 = vector.shape_cast %3 : vector<16x128xf32> to vector<1x16x128xf32>
    %38 = vector.broadcast %37 : vector<1x16x128xf32> to vector<3x16x128xf32>
    %39 = arith.mulf %25, %38 : vector<3x16x128xf32>
    %40 = vector.shape_cast %7 : vector<16x128xf32> to vector<1x16x128xf32>
    %41 = vector.broadcast %40 : vector<1x16x128xf32> to vector<3x16x128xf32>
    %42 = arith.mulf %18, %41 : vector<3x16x128xf32>
    %43 = vector.shape_cast %3 : vector<16x128xf32> to vector<1x16x128xf32>
    %44 = vector.broadcast %43 : vector<1x16x128xf32> to vector<3x16x128xf32>
    %45 = arith.mulf %36, %44 : vector<3x16x128xf32>
    %cst_26 = arith.constant 0.00392156886 : f32
    %46 = vector.broadcast %cst_26 : f32 to vector<3x16x128xf32>
    %47 = arith.mulf %42, %46 : vector<3x16x128xf32>
    %48 = arith.truncf %47 : vector<3x16x128xf32> to vector<3x16x128xbf16>
    %c0_27 = arith.constant 0 : index
    %c0_28 = arith.constant 0 : index
    %c0_29 = arith.constant 0 : index
    %49 = vector.load %arg6[%c0_27, %c0_28, %c0_29] : memref<3x16x128xbf16, #tpu.memory_space<vmem>>, vector<3x16x128xbf16>
    tpu.vector_store %arg6[%c0_27, %c0_28, %c0_29], %48 {strides = array<i32>} : memref<3x16x128xbf16, #tpu.memory_space<vmem>>, vector<3x16x128xbf16>,
    %cst_30 = arith.constant 0.00392156886 : f32
    %50 = vector.broadcast %cst_30 : f32 to vector<3x16x128xf32>
    %51 = arith.mulf %45, %50 : vector<3x16x128xf32>
    %52 = arith.truncf %51 : vector<3x16x128xf32> to vector<3x16x128xbf16>
    %c0_31 = arith.constant 0 : index
    %c0_32 = arith.constant 0 : index
    %c0_33 = arith.constant 0 : index
    %53 = vector.load %arg7[%c0_31, %c0_32, %c0_33] : memref<3x16x128xbf16, #tpu.memory_space<vmem>>, vector<3x16x128xbf16>
    tpu.vector_store %arg7[%c0_31, %c0_32, %c0_33], %52 {strides = array<i32>} : memref<3x16x128xbf16, #tpu.memory_space<vmem>>, vector<3x16x128xbf16>,
    %cst_34 = arith.constant 0.00392156886 : f32
    %54 = vector.broadcast %cst_34 : f32 to vector<3x16x128xf32>
    %55 = arith.mulf %39, %54 : vector<3x16x128xf32>
    %56 = arith.truncf %55 : vector<3x16x128xf32> to vector<3x16x128xbf16>
    %c0_35 = arith.constant 0 : index
    %c0_36 = arith.constant 0 : index
    %c0_37 = arith.constant 0 : index
    %57 = vector.load %arg8[%c0_35, %c0_36, %c0_37] : memref<3x16x128xbf16, #tpu.memory_space<vmem>>, vector<3x16x128xbf16>
    tpu.vector_store %arg8[%c0_35, %c0_36, %c0_37], %56 {strides = array<i32>} : memref<3x16x128xbf16, #tpu.memory_space<vmem>>, vector<3x16x128xbf16>,
    %58 = vector.shape_cast %3 : vector<16x128xf32> to vector<1x16x128xf32>
    %59 = vector.broadcast %58 : vector<1x16x128xf32> to vector<3x16x128xf32>
    %60 = arith.mulf %18, %59 : vector<3x16x128xf32>
    %cst_38 = arith.constant 0.00392156886 : f32
    %61 = vector.broadcast %cst_38 : f32 to vector<3x16x128xf32>
    %62 = arith.mulf %60, %61 : vector<3x16x128xf32>
    %63 = arith.truncf %62 : vector<3x16x128xf32> to vector<3x16x128xbf16>
    %c0_39 = arith.constant 0 : index
    %c0_40 = arith.constant 0 : index
    %c0_41 = arith.constant 0 : index
    %64 = vector.load %arg9[%c0_39, %c0_40, %c0_41] : memref<3x16x128xbf16, #tpu.memory_space<vmem>>, vector<3x16x128xbf16>
    tpu.vector_store %arg9[%c0_39, %c0_40, %c0_41], %63 {strides = array<i32>} : memref<3x16x128xbf16, #tpu.memory_space<vmem>>, vector<3x16x128xbf16>,
    %65 = arith.subf %39, %60 : vector<3x16x128xf32>
    %cst_42 = arith.constant 0.00392156886 : f32
    %66 = vector.broadcast %cst_42 : f32 to vector<3x16x128xf32>
    %67 = arith.mulf %65, %66 : vector<3x16x128xf32>
    %68 = math.absf %67 : vector<3x16x128xf32>
    %69 = vector.shape_cast %68 : vector<3x16x128xf32> to vector<6x8x128xf32>
    %cst_43 = arith.constant dense<0.000000e+00> : vector<8x128xf32>
    %70 = vector.multi_reduction <add>, %69, %cst_43 [0] : vector<6x8x128xf32> to vector<8x128xf32>
    %c0_44 = arith.constant 0 : index
    %c0_45 = arith.constant 0 : index
    %c0_46 = arith.constant 0 : index
    %71 = vector.load %arg10[%c0_44, %c0_45, %c0_46] : memref<1x8x128xf32, #tpu.memory_space<vmem>>, vector<1x8x128xf32>
    %72 = vector.shape_cast %71 : vector<1x8x128xf32> to vector<8x128xf32>
    %73 = vector.shape_cast %70 : vector<8x128xf32> to vector<1x8x128xf32>
    tpu.vector_store %arg10[%c0_44, %c0_45, %c0_46], %73 {strides = array<i32>} : memref<1x8x128xf32, #tpu.memory_space<vmem>>, vector<1x8x128xf32>,
    return
  }
  func.func @transform_0(%arg0: i32) -> (i32, i32, i32) {
    %c0_i32 = arith.constant 0 : i32
    %c0_i32_0 = arith.constant 0 : i32
    %c0_i32_1 = arith.constant 0 : i32
    return %c0_i32, %arg0, %c0_i32_0 : i32, i32, i32
  }
  func.func @transform_1(%arg0: i32) -> (i32, i32, i32) {
    %c0_i32 = arith.constant 0 : i32
    %c0_i32_0 = arith.constant 0 : i32
    %c0_i32_1 = arith.constant 0 : i32
    return %c0_i32, %arg0, %c0_i32_0 : i32, i32, i32
  }
  func.func @transform_2(%arg0: i32) -> (i32, i32, i32) {
    %c0_i32 = arith.constant 0 : i32
    %c0_i32_0 = arith.constant 0 : i32
    %c0_i32_1 = arith.constant 0 : i32
    return %c0_i32, %arg0, %c0_i32_0 : i32, i32, i32
  }
  func.func @transform_3(%arg0: i32) -> (i32, i32) {
    %c0_i32 = arith.constant 0 : i32
    %c0_i32_0 = arith.constant 0 : i32
    return %arg0, %c0_i32 : i32, i32
  }
  func.func @transform_4(%arg0: i32) -> (i32, i32) {
    %c0_i32 = arith.constant 0 : i32
    %c0_i32_0 = arith.constant 0 : i32
    return %arg0, %c0_i32 : i32, i32
  }
  func.func @transform_5(%arg0: i32) -> (i32, i32, i32) {
    %c0_i32 = arith.constant 0 : i32
    %c0_i32_0 = arith.constant 0 : i32
    %c0_i32_1 = arith.constant 0 : i32
    return %c0_i32, %arg0, %c0_i32_0 : i32, i32, i32
  }
  func.func @transform_6(%arg0: i32) -> (i32, i32, i32) {
    %c0_i32 = arith.constant 0 : i32
    %c0_i32_0 = arith.constant 0 : i32
    %c0_i32_1 = arith.constant 0 : i32
    return %c0_i32, %arg0, %c0_i32_0 : i32, i32, i32
  }
  func.func @transform_7(%arg0: i32) -> (i32, i32, i32) {
    %c0_i32 = arith.constant 0 : i32
    %c0_i32_0 = arith.constant 0 : i32
    %c0_i32_1 = arith.constant 0 : i32
    return %c0_i32, %arg0, %c0_i32_0 : i32, i32, i32
  }
  func.func @transform_8(%arg0: i32) -> (i32, i32, i32) {
    %c0_i32 = arith.constant 0 : i32
    %c0_i32_0 = arith.constant 0 : i32
    %c0_i32_1 = arith.constant 0 : i32
    return %c0_i32, %arg0, %c0_i32_0 : i32, i32, i32
  }
  func.func @transform_9(%arg0: i32) -> (i32, i32, i32) {
    %c0_i32 = arith.constant 0 : i32
    %c0_i32_0 = arith.constant 0 : i32
    %c0_i32_1 = arith.constant 0 : i32
    return %arg0, %c0_i32, %c0_i32_0 : i32, i32, i32
  }
}

</mosaic_0001>

<llo_original>
// kernel: tpu_custom_call.1
$region0: #{tpu_custom_call.1}
  #allocation0 [shape = 'u32[]', space=smem, size = 0x4, offset = 0x4, fixed_abs, tag = 'smem constant byte address 0x4 - core index']
  #allocation1 [shape = 'u32[144,128]{1,0:T(1,128)}', space=vmem, size = 0x12000, scoped, tag = 'internal scratch']
  #allocation18 [shape = 's32[]', space=sflag, size = 0x4, offset = 0, fixed_abs, tag = 'sflag constant byte address 0x0 - dummy sync flag']
  #allocation20 [shape = 's32[]', space=sflag, size = 0x4, offset = 0, fixed_abs, tag = 'sflag constant byte address 0x0 - dummy sync flag']
  #allocation22 [shape = 's32[]', space=sflag, size = 0x4, offset = 0, fixed_abs, tag = 'sflag constant byte address 0x0 - dummy sync flag']
  #allocation24 [shape = 's32[]', space=sflag, size = 0x4, offset = 0, fixed_abs, tag = 'sflag constant byte address 0x0 - dummy sync flag']
  #allocation26 [shape = 's32[]', space=sflag, size = 0x4, offset = 0, fixed_abs, tag = 'sflag constant byte address 0x0 - dummy sync flag']
  #allocation28 [shape = 's32[]', space=sflag, size = 0x4, offset = 0, fixed_abs, tag = 'sflag constant byte address 0x0 - dummy sync flag']
  #allocation30 [shape = 's32[]', space=sflag, size = 0x4, offset = 0, fixed_abs, tag = 'sflag constant byte address 0x0 - dummy sync flag']
  %s0 = inlined_call_operand.hbm [shape: f32[3,32,128], index: 0, kind: input, shape index: {}]
  %s1 = inlined_call_operand.hbm [shape: f32[3,32,128], index: 1, kind: input, shape index: {}]
  %s2 = inlined_call_operand.hbm [shape: f32[3,32,128], index: 2, kind: input, shape index: {}]
  %s3 = inlined_call_operand.hbm [shape: bf16[32,128], index: 3, kind: input, shape index: {}]
  %s4 = inlined_call_operand.hbm [shape: bf16[32,128], index: 4, kind: input, shape index: {}]
  %s5 = inlined_call_operand.hbm [shape: bf16[3,32,128], index: 5, kind: output, shape index: {0}]
  %s6 = inlined_call_operand.hbm [shape: bf16[3,32,128], index: 6, kind: output, shape index: {1}]
  %s7 = inlined_call_operand.hbm [shape: bf16[3,32,128], index: 7, kind: output, shape index: {2}]
  %s8 = inlined_call_operand.hbm [shape: bf16[3,32,128], index: 8, kind: output, shape index: {3}]
  %s9 = inlined_call_operand.hbm [shape: f32[2,8,128], index: 9, kind: output, shape index: {4}]
  %10 = xla_tuple %s5, %s6, %s7, %s8, %s9
  %s11 = sld [smem:[#allocation0]]
  $region105: #{tpu_custom_call.1} parent=0
    _
  %s13 = ssub.s32 1, %s11
  %s14 = scalar_select 0, %s13, %s11
  $region1: #{tpu_custom_call.1} parent=0
    #allocation2 [shape = 'u8[49152]{0}', space=vmem, size = 0xc000, scoped, tag = 'input window, operand 0']
    #allocation3 [shape = 's32[2]{0}', space=sflag, size = 0x8, scoped, tag = 'scoped memory for tpu_custom_call.1']
    #allocation4 [shape = 's32[2]{0}', space=sflag, size = 0x8, scoped, tag = 'scoped memory for tpu_custom_call.1']
    #allocation5 [shape = 'u8[49152]{0}', space=vmem, size = 0xc000, scoped, tag = 'input window, operand 1']
    #allocation6 [shape = 's32[2]{0}', space=sflag, size = 0x8, scoped, tag = 'scoped memory for tpu_custom_call.1']
    #allocation7 [shape = 'u8[49152]{0}', space=vmem, size = 0xc000, scoped, tag = 'input window, operand 2']
    #allocation8 [shape = 'u8[8192]{0}', space=vmem, size = 0x2000, scoped, tag = 'input window, operand 3']
    #allocation9 [shape = 's32[2]{0}', space=sflag, size = 0x8, scoped, tag = 'scoped memory for tpu_custom_call.1']
    #allocation10 [shape = 'u8[8192]{0}', space=vmem, size = 0x2000, scoped, tag = 'input window, operand 4']
    #allocation11 [shape = 'u8[24576]{0}', space=vmem, size = 0x6000, scoped, tag = 'output window, operand 0']
    #allocation12 [shape = 'u8[24576]{0}', space=vmem, size = 0x6000, scoped, tag = 'output window, operand 1']
    #allocation13 [shape = 's32[2]{0}', space=sflag, size = 0x8, scoped, tag = 'scoped memory for tpu_custom_call.1']
    #allocation14 [shape = 'u8[24576]{0}', space=vmem, size = 0x6000, scoped, tag = 'output window, operand 2']
    #allocation15 [shape = 'u8[24576]{0}', space=vmem, size = 0x6000, scoped, tag = 'output window, operand 3']
    #allocation16 [shape = 's32[2]{0}', space=sflag, size = 0x8, scoped, tag = 'scoped memory for tpu_custom_call.1']
    #allocation17 [shape = 'u8[8192]{0}', space=vmem, size = 0x2000, scoped, tag = 'output window, operand 4']
    %15 = vsyncpa [#allocation3], 0
    %s16 = scalar_lea.sflag [#allocation3], 1
    %17 = vsyncpa %s16, 0
    %18 = vsyncpa [#allocation6], 0
    %s19 = scalar_lea.sflag [#allocation6], 1
    %20 = vsyncpa %s19, 0
    %21 = vsyncpa [#allocation9], 0
    %s22 = scalar_lea.sflag [#allocation9], 1
    %23 = vsyncpa %s22, 0
    %24 = vsyncpa [#allocation4], 0
    %s25 = scalar_lea.sflag [#allocation4], 1
    %26 = vsyncpa %s25, 0
    %27 = vsyncpa [#allocation13], 0
    %s28 = scalar_lea.sflag [#allocation13], 1
    %29 = vsyncpa %s28, 0
    %30 = vsyncpa [#allocation16], 0
    %s31 = scalar_lea.sflag [#allocation16], 1
    %32 = vsyncpa %s31, 0
    loop: start=0, step=1, limit=4
    $region2: #{tpu_custom_call.1} parent=1 // loop_pre_header
      _
    $region3: #{tpu_custom_call.1} parent=1 // loop_header
      %s34 = sphi 0, %s38
      %p35 = scmp.ge.s32.totalorder %s34, 4
      %s44 = sphi 0, %s46
      %s47 = sphi 0, %s44
      %s48 = sphi 0, %s47
      %s64 = sphi 0, %s48
      %s70 = sphi 0, %s72
      %s73 = sphi 0, %s70
      %s74 = sphi 0, %s73
      %s90 = sphi 0, %s74
      %s96 = sphi 0, %s98
      %s99 = sphi 0, %s96
      %s100 = sphi 0, %s99
      %s116 = sphi 0, %s100
      %s122 = sphi 0, %s124
      %s125 = sphi 0, %s122
      %s126 = sphi 0, %s125
      %s142 = sphi 0, %s126
      %s148 = sphi 0, %s150
      %s151 = sphi 0, %s148
      %s152 = sphi 0, %s151
      %s168 = sphi 0, %s152
      %s174 = sphi 0, %s176
      %s177 = sphi 0, %s174
      %s178 = sphi 0, %s177
      %s194 = sphi 0, %s178
      %s200 = sphi 0, %s202
      %s203 = sphi 0, %s200
      %s204 = sphi 0, %s203
      %s220 = sphi 0, %s204
      %s226 = sphi 0, %s228
      %s229 = sphi 0, %s226
      %s230 = sphi 0, %s229
      %s246 = sphi 0, %s230
      %s252 = sphi 0, %s254
      %s255 = sphi 0, %s252
      %s256 = sphi 0, %s255
      %s272 = sphi 0, %s256
      %s278 = sphi 0, %s280
      %s281 = sphi 0, %s278
      %s282 = sphi 0, %s281
      %s298 = sphi 0, %s282
    $region4: #{tpu_custom_call.1} parent=1 // loop_header_branch
      %37 = sbr.rel (%p35) target = $region8
    $region5: #{tpu_custom_call.1} parent=1 // loop_body
      %s39 = ssub.s32 %s34, 1
      %s40 = ssub.s32 %s34, 2
      %s41 = sadd.s32 %s34, 1
      %s42 = ssub.s32 %s34, %s41
      %p43 = scmp.eq.s32.totalorder %s42, 0
      %s45 = sadd.s32 %s44, 1
      %s46 = scalar_select %p43, %s44, %s45
      %p49 = pneg %p43
      %p50 = scmp.eq.s32.totalorder %s34, 1
      %p51 = por %p49, %p50
      %p52 = scmp.ne.s32.totalorder %s44, %s47
      %p53 = scmp.eq.s32.totalorder %s34, 0
      %p54 = por %p52, %p53
      %p55 = scmp.ne.s32.totalorder %s44, %s47
      %p56 = scmp.eq.s32.totalorder %s39, 1
      %p57 = por %p55, %p56
      %p58 = scmp.ne.s32.totalorder %s47, %s48
      %p59 = scmp.eq.s32.totalorder %s39, 0
      %p60 = por %p58, %p59
      %p61 = scmp.ne.s32.totalorder %s47, %s48
      %p62 = scmp.eq.s32.totalorder %s40, 1
      %p63 = por %p61, %p62
      %p65 = scmp.ne.s32.totalorder %s48, %s64
      %p66 = scmp.eq.s32.totalorder %s40, 0
      %p67 = por %p65, %p66
      %s68 = ssub.s32 %s34, %s41
      %p69 = scmp.eq.s32.totalorder %s68, 0
      %s71 = sadd.s32 %s70, 1
      %s72 = scalar_select %p69, %s70, %s71
      %p75 = pneg %p69
      %p76 = scmp.eq.s32.totalorder %s34, 1
      %p77 = por %p75, %p76
      %p78 = scmp.ne.s32.totalorder %s70, %s73
      %p79 = scmp.eq.s32.totalorder %s34, 0
      %p80 = por %p78, %p79
      %p81 = scmp.ne.s32.totalorder %s70, %s73
      %p82 = scmp.eq.s32.totalorder %s39, 1
      %p83 = por %p81, %p82
      %p84 = scmp.ne.s32.totalorder %s73, %s74
      %p85 = scmp.eq.s32.totalorder %s39, 0
      %p86 = por %p84, %p85
      %p87 = scmp.ne.s32.totalorder %s73, %s74
      %p88 = scmp.eq.s32.totalorder %s40, 1
      %p89 = por %p87, %p88
      %p91 = scmp.ne.s32.totalorder %s74, %s90
      %p92 = scmp.eq.s32.totalorder %s40, 0
      %p93 = por %p91, %p92
      %s94 = ssub.s32 %s34, %s41
      %p95 = scmp.eq.s32.totalorder %s94, 0
      %s97 = sadd.s32 %s96, 1
      %s98 = scalar_select %p95, %s96, %s97
      %p101 = pneg %p95
      %p102 = scmp.eq.s32.totalorder %s34, 1
      %p103 = por %p101, %p102
      %p104 = scmp.ne.s32.totalorder %s96, %s99
      %p105 = scmp.eq.s32.totalorder %s34, 0
      %p106 = por %p104, %p105
      %p107 = scmp.ne.s32.totalorder %s96, %s99
      %p108 = scmp.eq.s32.totalorder %s39, 1
      %p109 = por %p107, %p108
      %p110 = scmp.ne.s32.totalorder %s99, %s100
      %p111 = scmp.eq.s32.totalorder %s39, 0
      %p112 = por %p110, %p111
      %p113 = scmp.ne.s32.totalorder %s99, %s100
      %p114 = scmp.eq.s32.totalorder %s40, 1
      %p115 = por %p113, %p114
      %p117 = scmp.ne.s32.totalorder %s100, %s116
      %p118 = scmp.eq.s32.totalorder %s40, 0
      %p119 = por %p117, %p118
      %s120 = ssub.s32 %s34, %s41
      %p121 = scmp.eq.s32.totalorder %s120, 0
      %s123 = sadd.s32 %s122, 1
      %s124 = scalar_select %p121, %s122, %s123
      %p127 = pneg %p121
      %p128 = scmp.eq.s32.totalorder %s34, 1
      %p129 = por %p127, %p128
      %p130 = scmp.ne.s32.totalorder %s122, %s125
      %p131 = scmp.eq.s32.totalorder %s34, 0
      %p132 = por %p130, %p131
      %p133 = scmp.ne.s32.totalorder %s122, %s125
      %p134 = scmp.eq.s32.totalorder %s39, 1
      %p135 = por %p133, %p134
      %p136 = scmp.ne.s32.totalorder %s125, %s126
      %p137 = scmp.eq.s32.totalorder %s39, 0
      %p138 = por %p136, %p137
      %p139 = scmp.ne.s32.totalorder %s125, %s126
      %p140 = scmp.eq.s32.totalorder %s40, 1
      %p141 = por %p139, %p140
      %p143 = scmp.ne.s32.totalorder %s126, %s142
      %p144 = scmp.eq.s32.totalorder %s40, 0
      %p145 = por %p143, %p144
      %s146 = ssub.s32 %s34, %s41
      %p147 = scmp.eq.s32.totalorder %s146, 0
      %s149 = sadd.s32 %s148, 1
      %s150 = scalar_select %p147, %s148, %s149
      %p153 = pneg %p147
      %p154 = scmp.eq.s32.totalorder %s34, 1
      %p155 = por %p153, %p154
      %p156 = scmp.ne.s32.totalorder %s148, %s151
      %p157 = scmp.eq.s32.totalorder %s34, 0
      %p158 = por %p156, %p157
      %p159 = scmp.ne.s32.totalorder %s148, %s151
      %p160 = scmp.eq.s32.totalorder %s39, 1
      %p161 = por %p159, %p160
      %p162 = scmp.ne.s32.totalorder %s151, %s152
      %p163 = scmp.eq.s32.totalorder %s39, 0
      %p164 = por %p162, %p163
      %p165 = scmp.ne.s32.totalorder %s151, %s152
      %p166 = scmp.eq.s32.totalorder %s40, 1
      %p167 = por %p165, %p166
      %p169 = scmp.ne.s32.totalorder %s152, %s168
      %p170 = scmp.eq.s32.totalorder %s40, 0
      %p171 = por %p169, %p170
      %s172 = ssub.s32 %s34, %s41
      %p173 = scmp.eq.s32.totalorder %s172, 0
      %s175 = sadd.s32 %s174, 1
      %s176 = scalar_select %p173, %s174, %s175
      %p179 = pneg %p173
      %p180 = scmp.eq.s32.totalorder %s34, 1
      %p181 = por %p179, %p180
      %p182 = scmp.ne.s32.totalorder %s174, %s177
      %p183 = scmp.eq.s32.totalorder %s34, 0
      %p184 = por %p182, %p183
      %p185 = scmp.ne.s32.totalorder %s174, %s177
      %p186 = scmp.eq.s32.totalorder %s39, 1
      %p187 = por %p185, %p186
      %p188 = scmp.ne.s32.totalorder %s177, %s178
      %p189 = scmp.eq.s32.totalorder %s39, 0
      %p190 = por %p188, %p189
      %p191 = scmp.ne.s32.totalorder %s177, %s178
      %p192 = scmp.eq.s32.totalorder %s40, 1
      %p193 = por %p191, %p192
      %p195 = scmp.ne.s32.totalorder %s178, %s194
      %p196 = scmp.eq.s32.totalorder %s40, 0
      %p197 = por %p195, %p196
      %s198 = ssub.s32 %s34, %s41
      %p199 = scmp.eq.s32.totalorder %s198, 0
      %s201 = sadd.s32 %s200, 1
      %s202 = scalar_select %p199, %s200, %s201
      %p205 = pneg %p199
      %p206 = scmp.eq.s32.totalorder %s34, 1
      %p207 = por %p205, %p206
      %p208 = scmp.ne.s32.totalorder %s200, %s203
      %p209 = scmp.eq.s32.totalorder %s34, 0
      %p210 = por %p208, %p209
      %p211 = scmp.ne.s32.totalorder %s200, %s203
      %p212 = scmp.eq.s32.totalorder %s39, 1
      %p213 = por %p211, %p212
      %p214 = scmp.ne.s32.totalorder %s203, %s204
      %p215 = scmp.eq.s32.totalorder %s39, 0
      %p216 = por %p214, %p215
      %p217 = scmp.ne.s32.totalorder %s203, %s204
      %p218 = scmp.eq.s32.totalorder %s40, 1
      %p219 = por %p217, %p218
      %p221 = scmp.ne.s32.totalorder %s204, %s220
      %p222 = scmp.eq.s32.totalorder %s40, 0
      %p223 = por %p221, %p222
      %s224 = ssub.s32 %s34, %s41
      %p225 = scmp.eq.s32.totalorder %s224, 0
      %s227 = sadd.s32 %s226, 1
      %s228 = scalar_select %p225, %s226, %s227
      %p231 = pneg %p225
      %p232 = scmp.eq.s32.totalorder %s34, 1
      %p233 = por %p231, %p232
      %p234 = scmp.ne.s32.totalorder %s226, %s229
      %p235 = scmp.eq.s32.totalorder %s34, 0
      %p236 = por %p234, %p235
      %p237 = scmp.ne.s32.totalorder %s226, %s229
      %p238 = scmp.eq.s32.totalorder %s39, 1
      %p239 = por %p237, %p238
      %p240 = scmp.ne.s32.totalorder %s229, %s230
      %p241 = scmp.eq.s32.totalorder %s39, 0
      %p242 = por %p240, %p241
      %p243 = scmp.ne.s32.totalorder %s229, %s230
      %p244 = scmp.eq.s32.totalorder %s40, 1
      %p245 = por %p243, %p244
      %p247 = scmp.ne.s32.totalorder %s230, %s246
      %p248 = scmp.eq.s32.totalorder %s40, 0
      %p249 = por %p247, %p248
      %s250 = ssub.s32 %s34, %s41
      %p251 = scmp.eq.s32.totalorder %s250, 0
      %s253 = sadd.s32 %s252, 1
      %s254 = scalar_select %p251, %s252, %s253
      %p257 = pneg %p251
      %p258 = scmp.eq.s32.totalorder %s34, 1
      %p259 = por %p257, %p258
      %p260 = scmp.ne.s32.totalorder %s252, %s255
      %p261 = scmp.eq.s32.totalorder %s34, 0
      %p262 = por %p260, %p261
      %p263 = scmp.ne.s32.totalorder %s252, %s255
      %p264 = scmp.eq.s32.totalorder %s39, 1
      %p265 = por %p263, %p264
      %p266 = scmp.ne.s32.totalorder %s255, %s256
      %p267 = scmp.eq.s32.totalorder %s39, 0
      %p268 = por %p266, %p267
      %p269 = scmp.ne.s32.totalorder %s255, %s256
      %p270 = scmp.eq.s32.totalorder %s40, 1
      %p271 = por %p269, %p270
      %p273 = scmp.ne.s32.totalorder %s256, %s272
      %p274 = scmp.eq.s32.totalorder %s40, 0
      %p275 = por %p273, %p274
      %s276 = ssub.s32 %s34, %s41
      %p277 = scmp.eq.s32.totalorder %s276, 0
      %s279 = sadd.s32 %s278, 1
      %s280 = scalar_select %p277, %s278, %s279
      %p283 = pneg %p277
      %p284 = scmp.eq.s32.totalorder %s34, 1
      %p285 = por %p283, %p284
      %p286 = scmp.ne.s32.totalorder %s278, %s281
      %p287 = scmp.eq.s32.totalorder %s34, 0
      %p288 = por %p286, %p287
      %p289 = scmp.ne.s32.totalorder %s278, %s281
      %p290 = scmp.eq.s32.totalorder %s39, 1
      %p291 = por %p289, %p290
      %p292 = scmp.ne.s32.totalorder %s281, %s282
      %p293 = scmp.eq.s32.totalorder %s39, 0
      %p294 = por %p292, %p293
      %p295 = scmp.ne.s32.totalorder %s281, %s282
      %p296 = scmp.eq.s32.totalorder %s40, 1
      %p297 = por %p295, %p296
      %p299 = scmp.ne.s32.totalorder %s282, %s298
      %p300 = scmp.eq.s32.totalorder %s40, 0
      %p301 = por %p299, %p300
      %p302 = scmp.le.s32.totalorder 1, %s34
      %p303 = scmp.lt.s32.totalorder %s34, 3
      %p304 = pnand %p302, %p303
      %p305 = pneg %p304
      // Predicated region
      $region9: #{tpu_custom_call.1} parent=5 // pred_check
        _
      $region10: #{tpu_custom_call.1} parent=5 // pred_check_branch
        %307 = sbr.rel (%p304) target = $region12
      $region11: #{tpu_custom_call.1} parent=5 // pred_region
        %s308 = ssub.s32 %s34, 1
      $region12: #{tpu_custom_call.1} parent=5 // pred_fallthru
        _
      %p309 = scmp.lt.s32.totalorder %s34, 2
      // Predicated region
      $region13: #{tpu_custom_call.1} parent=5 // pred_check
        %p310 = pneg %p309
      $region14: #{tpu_custom_call.1} parent=5 // pred_check_branch
        %312 = sbr.rel (%p310) target = $region16
      $region15: #{tpu_custom_call.1} parent=5 // pred_region
        // Predicated region
        $region17: #{tpu_custom_call.1} parent=15 // pred_check
          %p313 = pneg %p54
        $region18: #{tpu_custom_call.1} parent=15 // pred_check_branch
          %315 = sbr.rel (%p313) target = $region20
        $region19: #{tpu_custom_call.1} parent=15 // pred_region
          #allocation19 [shape = 'u32[6]{0}', space=smem, size = 0x18, scoped, tag = 'DMA stride descriptor']
          %s316 = sand.u32 %s44, 1
          %s317 = scalar_lea.sflag [#allocation3], %s316
          %s318 = sand.u32 %s44, 1
          %s319 = smul.addr %s318, 48
          %s320 = scalar_lea.vmem [#allocation2], %s319
          %s321 = smul.u32 2, %s34
          %s323 = ssub.s32 768, 768
          %324 = vsyncadd %s317, %s323
          %s325 = smul.addr %s321, 128
          %s326 = scalar_lea.hbm %s0, %s325
          %s328 = sshll.u32 1, 14
          %s329 = sxor.u32 4294967295, %s328
          %s331 = sld [smem:[#allocation0]]
          %s332 = sadd.s32 2, %s331
          %s334 = sshll.u32 7, 26
          %s335 = sxor.u32 4294967295, %s334
          %s336 = sand.u32 0, %s335
          %s337 = sshll.u32 %s332, 26
          %s338 = sor.u32 %s336, %s337
          %s339 = sshll.u32 %s320, 4
          %s340 = int_to_ptr.vmem [resolvable:$true] %s339
          %346 = sst [smem:[#allocation19]] 512
          %s347 = scalar_lea.smem [#allocation19], 1
          %348 = sst [smem:[%s347]] 256
          %s349 = scalar_lea.smem [#allocation19], 2
          %350 = sst [smem:[%s349]] 2
          %s351 = scalar_lea.smem [#allocation19], 3
          %352 = sst [smem:[%s351]] 128
          %s353 = scalar_lea.smem [#allocation19], 4
          %354 = sst [smem:[%s353]] 128
          %s355 = scalar_lea.smem [#allocation19], 5
          %356 = sst [smem:[%s355]] 8
          %358 = dma.general %s326, 768, %s340, %s317, [#allocation18], [#allocation19], %s338, 0
        $region20: #{tpu_custom_call.1} parent=15 // pred_fallthru
          _
        // Predicated region
        $region21: #{tpu_custom_call.1} parent=15 // pred_check
          %p359 = pneg %p80
        $region22: #{tpu_custom_call.1} parent=15 // pred_check_branch
          %361 = sbr.rel (%p359) target = $region24
        $region23: #{tpu_custom_call.1} parent=15 // pred_region
          #allocation21 [shape = 'u32[6]{0}', space=smem, size = 0x18, scoped, tag = 'DMA stride descriptor']
          %s362 = sand.u32 %s34, 1
          %s363 = scalar_lea.sflag [#allocation6], %s362
          %s364 = sand.u32 %s70, 1
          %s365 = smul.addr %s364, 48
          %s366 = scalar_lea.vmem [#allocation5], %s365
          %s367 = smul.u32 2, %s34
          %s369 = ssub.s32 768, 768
          %370 = vsyncadd %s363, %s369
          %s371 = smul.addr %s367, 128
          %s372 = scalar_lea.hbm %s1, %s371
          %s374 = sshll.u32 1, 14
          %s375 = sxor.u32 4294967295, %s374
          %s377 = sld [smem:[#allocation0]]
          %s378 = sadd.s32 2, %s377
          %s380 = sshll.u32 7, 26
          %s381 = sxor.u32 4294967295, %s380
          %s382 = sand.u32 0, %s381
          %s383 = sshll.u32 %s378, 26
          %s384 = sor.u32 %s382, %s383
          %s385 = sshll.u32 %s366, 4
          %s386 = int_to_ptr.vmem [resolvable:$true] %s385
          %392 = sst [smem:[#allocation21]] 512
          %s393 = scalar_lea.smem [#allocation21], 1
          %394 = sst [smem:[%s393]] 256
          %s395 = scalar_lea.smem [#allocation21], 2
          %396 = sst [smem:[%s395]] 2
          %s397 = scalar_lea.smem [#allocation21], 3
          %398 = sst [smem:[%s397]] 128
          %s399 = scalar_lea.smem [#allocation21], 4
          %400 = sst [smem:[%s399]] 128
          %s401 = scalar_lea.smem [#allocation21], 5
          %402 = sst [smem:[%s401]] 8
          %404 = dma.general %s372, 768, %s386, %s363, [#allocation20], [#allocation21], %s384, 0
        $region24: #{tpu_custom_call.1} parent=15 // pred_fallthru
          _
        // Predicated region
        $region25: #{tpu_custom_call.1} parent=15 // pred_check
          %p405 = pneg %p106
        $region26: #{tpu_custom_call.1} parent=15 // pred_check_branch
          %407 = sbr.rel (%p405) target = $region28
        $region27: #{tpu_custom_call.1} parent=15 // pred_region
          #allocation23 [shape = 'u32[6]{0}', space=smem, size = 0x18, scoped, tag = 'DMA stride descriptor']
          %s408 = sand.u32 %s34, 1
          %s409 = scalar_lea.sflag [#allocation6], %s408
          %s410 = sand.u32 %s96, 1
          %s411 = smul.addr %s410, 48
          %s412 = scalar_lea.vmem [#allocation7], %s411
          %s413 = smul.u32 2, %s34
          %s415 = ssub.s32 768, 768
          %416 = vsyncadd %s409, %s415
          %s417 = smul.addr %s413, 128
          %s418 = scalar_lea.hbm %s2, %s417
          %s420 = sshll.u32 1, 14
          %s421 = sxor.u32 4294967295, %s420
          %s423 = sld [smem:[#allocation0]]
          %s424 = sadd.s32 2, %s423
          %s426 = sshll.u32 7, 26
          %s427 = sxor.u32 4294967295, %s426
          %s428 = sand.u32 0, %s427
          %s429 = sshll.u32 %s424, 26
          %s430 = sor.u32 %s428, %s429
          %s431 = sshll.u32 %s412, 4
          %s432 = int_to_ptr.vmem [resolvable:$true] %s431
          %438 = sst [smem:[#allocation23]] 512
          %s439 = scalar_lea.smem [#allocation23], 1
          %440 = sst [smem:[%s439]] 256
          %s441 = scalar_lea.smem [#allocation23], 2
          %442 = sst [smem:[%s441]] 2
          %s443 = scalar_lea.smem [#allocation23], 3
          %444 = sst [smem:[%s443]] 128
          %s445 = scalar_lea.smem [#allocation23], 4
          %446 = sst [smem:[%s445]] 128
          %s447 = scalar_lea.smem [#allocation23], 5
          %448 = sst [smem:[%s447]] 8
          %450 = dma.general %s418, 768, %s432, %s409, [#allocation22], [#allocation23], %s430, 0
        $region28: #{tpu_custom_call.1} parent=15 // pred_fallthru
          _
        // Predicated region
        $region29: #{tpu_custom_call.1} parent=15 // pred_check
          %p451 = pneg %p132
        $region30: #{tpu_custom_call.1} parent=15 // pred_check_branch
          %453 = sbr.rel (%p451) target = $region32
        $region31: #{tpu_custom_call.1} parent=15 // pred_region
          %s454 = sand.u32 %s34, 1
          %s455 = scalar_lea.sflag [#allocation9], %s454
          %s456 = sand.u32 %s122, 1
          %s457 = smul.addr %s456, 8
          %s458 = scalar_lea.vmem [#allocation8], %s457
          %s459 = smul.u32 2, %s34
          %s461 = ssub.s32 128, 128
          %462 = vsyncadd %s455, %s461
          %s463 = smul.addr %s459, 64
          %s464 = scalar_lea.hbm %s3, %s463
          %s465 = sshll.u32 %s458, 4
          %s466 = int_to_ptr.vmem [resolvable:$true] %s465
          %471 = dma.hbm_to_vmem [thread:$0]  %s464, 128, %s466, %s455, 64, 64, 4
        $region32: #{tpu_custom_call.1} parent=15 // pred_fallthru
          _
        // Predicated region
        $region33: #{tpu_custom_call.1} parent=15 // pred_check
          %p472 = pneg %p158
        $region34: #{tpu_custom_call.1} parent=15 // pred_check_branch
          %474 = sbr.rel (%p472) target = $region36
        $region35: #{tpu_custom_call.1} parent=15 // pred_region
          %s475 = sand.u32 %s34, 1
          %s476 = scalar_lea.sflag [#allocation9], %s475
          %s477 = sand.u32 %s148, 1
          %s478 = smul.addr %s477, 8
          %s479 = scalar_lea.vmem [#allocation10], %s478
          %s480 = smul.u32 2, %s34
          %s482 = ssub.s32 128, 128
          %483 = vsyncadd %s476, %s482
          %s484 = smul.addr %s480, 64
          %s485 = scalar_lea.hbm %s4, %s484
          %s486 = sshll.u32 %s479, 4
          %s487 = int_to_ptr.vmem [resolvable:$true] %s486
          %492 = dma.hbm_to_vmem [thread:$0]  %s485, 128, %s487, %s476, 64, 64, 4
        $region36: #{tpu_custom_call.1} parent=15 // pred_fallthru
          _
      $region16: #{tpu_custom_call.1} parent=5 // pred_fallthru
        _
      %p493 = scmp.le.s32.totalorder 1, %s34
      %p494 = scmp.lt.s32.totalorder %s34, 3
      %p495 = pnand %p493, %p494
      %p496 = pneg %p495
      // Predicated region
      $region37: #{tpu_custom_call.1} parent=5 // pred_check
        _
      $region38: #{tpu_custom_call.1} parent=5 // pred_check_branch
        %498 = sbr.rel (%p495) target = $region40
      $region39: #{tpu_custom_call.1} parent=5 // pred_region
        %s499 = ssub.s32 %s34, 1
        %s500 = sand.u32 %s47, 1
        %s501 = scalar_lea.sflag [#allocation3], %s500
        %s502 = sand.u32 %s47, 1
        %s503 = smul.addr %s502, 48
        %s504 = scalar_lea.vmem [#allocation2], %s503
        // Predicated region
        $region41: #{tpu_custom_call.1} parent=39 // pred_check
          %p505 = pneg %p60
        $region42: #{tpu_custom_call.1} parent=39 // pred_check_branch
          %507 = sbr.rel (%p505) target = $region44
        $region43: #{tpu_custom_call.1} parent=39 // pred_region
          %508 = dma.done %s501, 768
        $region44: #{tpu_custom_call.1} parent=39 // pred_fallthru
          _
        %s509 = sand.u32 %s39, 1
        %s510 = scalar_lea.sflag [#allocation6], %s509
        %s511 = sand.u32 %s73, 1
        %s512 = smul.addr %s511, 48
        %s513 = scalar_lea.vmem [#allocation5], %s512
        // Predicated region
        $region45: #{tpu_custom_call.1} parent=39 // pred_check
          %p514 = pneg %p86
        $region46: #{tpu_custom_call.1} parent=39 // pred_check_branch
          %516 = sbr.rel (%p514) target = $region48
        $region47: #{tpu_custom_call.1} parent=39 // pred_region
          %517 = dma.done %s510, 768
        $region48: #{tpu_custom_call.1} parent=39 // pred_fallthru
          _
        %s518 = sand.u32 %s39, 1
        %s519 = scalar_lea.sflag [#allocation6], %s518
        %s520 = sand.u32 %s99, 1
        %s521 = smul.addr %s520, 48
        %s522 = scalar_lea.vmem [#allocation7], %s521
        // Predicated region
        $region49: #{tpu_custom_call.1} parent=39 // pred_check
          %p523 = pneg %p112
        $region50: #{tpu_custom_call.1} parent=39 // pred_check_branch
          %525 = sbr.rel (%p523) target = $region52
        $region51: #{tpu_custom_call.1} parent=39 // pred_region
          %526 = dma.done %s519, 768
        $region52: #{tpu_custom_call.1} parent=39 // pred_fallthru
          _
        %s527 = sand.u32 %s39, 1
        %s528 = scalar_lea.sflag [#allocation9], %s527
        %s529 = sand.u32 %s125, 1
        %s530 = smul.addr %s529, 8
        %s531 = scalar_lea.vmem [#allocation8], %s530
        // Predicated region
        $region53: #{tpu_custom_call.1} parent=39 // pred_check
          %p532 = pneg %p138
        $region54: #{tpu_custom_call.1} parent=39 // pred_check_branch
          %534 = sbr.rel (%p532) target = $region56
        $region55: #{tpu_custom_call.1} parent=39 // pred_region
          %535 = dma.done %s528, 128
        $region56: #{tpu_custom_call.1} parent=39 // pred_fallthru
          _
        %s536 = sand.u32 %s39, 1
        %s537 = scalar_lea.sflag [#allocation9], %s536
        %s538 = sand.u32 %s151, 1
        %s539 = smul.addr %s538, 8
        %s540 = scalar_lea.vmem [#allocation10], %s539
        // Predicated region
        $region57: #{tpu_custom_call.1} parent=39 // pred_check
          %p541 = pneg %p164
        $region58: #{tpu_custom_call.1} parent=39 // pred_check_branch
          %543 = sbr.rel (%p541) target = $region60
        $region59: #{tpu_custom_call.1} parent=39 // pred_region
          %544 = dma.done %s537, 128
        $region60: #{tpu_custom_call.1} parent=39 // pred_fallthru
          _
        %s545 = sand.u32 %s47, 1
        %s546 = scalar_lea.sflag [#allocation3], %s545
        %s547 = sand.u32 %s47, 1
        %s548 = smul.addr %s547, 48
        %s549 = scalar_lea.vmem [#allocation2], %s548
        %p550 = pneg %p60
        %p551 = pneg %p57
        %s552 = sand.u32 %s39, 1
        %s553 = scalar_lea.sflag [#allocation6], %s552
        %s554 = sand.u32 %s73, 1
        %s555 = smul.addr %s554, 48
        %s556 = scalar_lea.vmem [#allocation5], %s555
        %p557 = pneg %p86
        %p558 = pneg %p83
        %s559 = sand.u32 %s39, 1
        %s560 = scalar_lea.sflag [#allocation6], %s559
        %s561 = sand.u32 %s99, 1
        %s562 = smul.addr %s561, 48
        %s563 = scalar_lea.vmem [#allocation7], %s562
        %p564 = pneg %p112
        %p565 = pneg %p109
        %s566 = sand.u32 %s39, 1
        %s567 = scalar_lea.sflag [#allocation9], %s566
        %s568 = sand.u32 %s125, 1
        %s569 = smul.addr %s568, 8
        %s570 = scalar_lea.vmem [#allocation8], %s569
        %p571 = pneg %p138
        %p572 = pneg %p135
        %s573 = sand.u32 %s39, 1
        %s574 = scalar_lea.sflag [#allocation9], %s573
        %s575 = sand.u32 %s151, 1
        %s576 = smul.addr %s575, 8
        %s577 = scalar_lea.vmem [#allocation10], %s576
        %p578 = pneg %p164
        %p579 = pneg %p161
        %p580 = pneg %p190
        %p581 = pneg %p187
        %s582 = sand.u32 %s177, 1
        %s583 = scalar_lea.sflag [#allocation4], %s582
        %s584 = sand.u32 %s177, 1
        %s585 = smul.addr %s584, 24
        %s586 = scalar_lea.vmem [#allocation11], %s585
        %p587 = pneg %p216
        %p588 = pneg %p213
        %s589 = sand.u32 %s39, 1
        %s590 = scalar_lea.sflag [#allocation13], %s589
        %s591 = sand.u32 %s203, 1
        %s592 = smul.addr %s591, 24
        %s593 = scalar_lea.vmem [#allocation12], %s592
        %p594 = pneg %p242
        %p595 = pneg %p239
        %s596 = sand.u32 %s39, 1
        %s597 = scalar_lea.sflag [#allocation13], %s596
        %s598 = sand.u32 %s229, 1
        %s599 = smul.addr %s598, 24
        %s600 = scalar_lea.vmem [#allocation14], %s599
        %p601 = pneg %p268
        %p602 = pneg %p265
        %s603 = sand.u32 %s39, 1
        %s604 = scalar_lea.sflag [#allocation16], %s603
        %s605 = sand.u32 %s255, 1
        %s606 = smul.addr %s605, 24
        %s607 = scalar_lea.vmem [#allocation15], %s606
        %p608 = pneg %p294
        %p609 = pneg %p291
        %s610 = sand.u32 %s39, 1
        %s611 = scalar_lea.sflag [#allocation16], %s610
        %s612 = sand.u32 %s281, 1
        %s613 = smul.addr %s612, 8
        %s614 = scalar_lea.vmem [#allocation17], %s613
        %s615 = smul.u32 2, %s39
        %s616 = smul.u32 2, %s39
        %s617 = smul.u32 2, %s39
        %s618 = smul.u32 2, %s39
        %s619 = smul.u32 2, %s39
        %s620 = smul.u32 2, %s39
        %s621 = smul.u32 2, %s39
        %s622 = smul.u32 2, %s39
        %s623 = smul.u32 2, %s39
        %v624 = vld [vmem:[%s531] sm:$0xf]
        %v625 = vld [vmem:[%s531 + $0x4] sm:$0xf]
        %v626 = vunpack.c.l.bf16 %v624
        %v627 = vunpack.c.l.bf16 %v625
        %v628 = vmul.f32 %v626, 0.003921569
        %v629 = vmul.f32 %v627, 0.003921569
        %v630 = vld [vmem:[%s540] sm:$0xf]
        %v631 = vld [vmem:[%s540 + $0x4] sm:$0xf]
        %v632 = vunpack.c.l.bf16 %v630
        %v633 = vunpack.c.l.bf16 %v631
        %v634 = vmul.f32 %v632, 0.003921569
        %v635 = vmul.f32 %v633, 0.003921569
        %v636 = vld [vmem:[%s513] sm:$0xff]
        %v637 = vld [vmem:[%s513 + $0x8] sm:$0xff]
        %v638 = vld [vmem:[%s513 + $0x10] sm:$0xff]
        %v639 = vld [vmem:[%s513 + $0x18] sm:$0xff]
        %v640 = vld [vmem:[%s513 + $0x20] sm:$0xff]
        %v641 = vld [vmem:[%s513 + $0x28] sm:$0xff]
        %v642 = vadd.f32 %v636, 1.0
        %v643 = vadd.f32 %v637, 1.0
        %v644 = vadd.f32 %v638, 1.0
        %v645 = vadd.f32 %v639, 1.0
        %v646 = vadd.f32 %v640, 1.0
        %v647 = vadd.f32 %v641, 1.0
        %v648 = vmul.f32 %v642, 0.5
        %v649 = vmul.f32 %v643, 0.5
        %v650 = vmul.f32 %v644, 0.5
        %v651 = vmul.f32 %v645, 0.5
        %v652 = vmul.f32 %v646, 0.5
        %v653 = vmul.f32 %v647, 0.5
        %v654 = vmax.f32 %v648, 0.0
        %v655 = vmax.f32 %v649, 0.0
        %v656 = vmax.f32 %v650, 0.0
        %v657 = vmax.f32 %v651, 0.0
        %v658 = vmax.f32 %v652, 0.0
        %v659 = vmax.f32 %v653, 0.0
        %v660 = vmin.f32 %v654, 1.0
        %v661 = vmin.f32 %v655, 1.0
        %v662 = vmin.f32 %v656, 1.0
        %v663 = vmin.f32 %v657, 1.0
        %v664 = vmin.f32 %v658, 1.0
        %v665 = vmin.f32 %v659, 1.0
        %v666 = vmul.f32 %v660, 255.0
        %v667 = vmul.f32 %v661, 255.0
        %v668 = vmul.f32 %v662, 255.0
        %v669 = vmul.f32 %v663, 255.0
        %v670 = vmul.f32 %v664, 255.0
        %v671 = vmul.f32 %v665, 255.0
        %v672 = vld [vmem:[%s504] sm:$0xff]
        %v673 = vld [vmem:[%s504 + $0x8] sm:$0xff]
        %v674 = vld [vmem:[%s504 + $0x10] sm:$0xff]
        %v675 = vld [vmem:[%s504 + $0x18] sm:$0xff]
        %v676 = vld [vmem:[%s504 + $0x20] sm:$0xff]
        %v677 = vld [vmem:[%s504 + $0x28] sm:$0xff]
        %v678 = vmax.f32 %v672, 0.0
        %v679 = vmax.f32 %v673, 0.0
        %v680 = vmax.f32 %v674, 0.0
        %v681 = vmax.f32 %v675, 0.0
        %v682 = vmax.f32 %v676, 0.0
        %v683 = vmax.f32 %v677, 0.0
        %v684 = vmin.f32 %v678, 1.0
        %v685 = vmin.f32 %v679, 1.0
        %v686 = vmin.f32 %v680, 1.0
        %v687 = vmin.f32 %v681, 1.0
        %v688 = vmin.f32 %v682, 1.0
        %v689 = vmin.f32 %v683, 1.0
        %v690 = vmul.f32 %v684, 255.0
        %v691 = vmul.f32 %v685, 255.0
        %v692 = vmul.f32 %v686, 255.0
        %v693 = vmul.f32 %v687, 255.0
        %v694 = vmul.f32 %v688, 255.0
        %v695 = vmul.f32 %v689, 255.0
        %v696 = vld [vmem:[%s522] sm:$0xff]
        %v697 = vld [vmem:[%s522 + $0x8] sm:$0xff]
        %v698 = vld [vmem:[%s522 + $0x10] sm:$0xff]
        %v699 = vld [vmem:[%s522 + $0x18] sm:$0xff]
        %v700 = vld [vmem:[%s522 + $0x20] sm:$0xff]
        %v701 = vld [vmem:[%s522 + $0x28] sm:$0xff]
        %v702 = vadd.f32 %v696, 1.0
        %v703 = vadd.f32 %v697, 1.0
        %v704 = vadd.f32 %v698, 1.0
        %v705 = vadd.f32 %v699, 1.0
        %v706 = vadd.f32 %v700, 1.0
        %v707 = vadd.f32 %v701, 1.0
        %v708 = vmul.f32 %v702, 0.5
        %v709 = vmul.f32 %v703, 0.5
        %v710 = vmul.f32 %v704, 0.5
        %v711 = vmul.f32 %v705, 0.5
        %v712 = vmul.f32 %v706, 0.5
        %v713 = vmul.f32 %v707, 0.5
        %v714 = vmax.f32 %v708, 0.0
        %v715 = vmax.f32 %v709, 0.0
        %v716 = vmax.f32 %v710, 0.0
        %v717 = vmax.f32 %v711, 0.0
        %v718 = vmax.f32 %v712, 0.0
        %v719 = vmax.f32 %v713, 0.0
        %v720 = vmin.f32 %v714, 1.0
        %v721 = vmin.f32 %v715, 1.0
        %v722 = vmin.f32 %v716, 1.0
        %v723 = vmin.f32 %v717, 1.0
        %v724 = vmin.f32 %v718, 1.0
        %v725 = vmin.f32 %v719, 1.0
        %v726 = vmul.f32 %v720, 255.0
        %v727 = vmul.f32 %v721, 255.0
        %v728 = vmul.f32 %v722, 255.0
        %v729 = vmul.f32 %v723, 255.0
        %v730 = vmul.f32 %v724, 255.0
        %v731 = vmul.f32 %v725, 255.0
        %v732 = vmul.f32 %v690, %v628
        %v733 = vmul.f32 %v691, %v629
        %v734 = vmul.f32 %v692, %v628
        %v735 = vmul.f32 %v693, %v629
        %v736 = vmul.f32 %v694, %v628
        %v737 = vmul.f32 %v695, %v629
        %v738 = vmul.f32 %v666, %v634
        %v739 = vmul.f32 %v667, %v635
        %v740 = vmul.f32 %v668, %v634
        %v741 = vmul.f32 %v669, %v635
        %v742 = vmul.f32 %v670, %v634
        %v743 = vmul.f32 %v671, %v635
        %v744 = vmul.f32 %v726, %v628
        %v745 = vmul.f32 %v727, %v629
        %v746 = vmul.f32 %v728, %v628
        %v747 = vmul.f32 %v729, %v629
        %v748 = vmul.f32 %v730, %v628
        %v749 = vmul.f32 %v731, %v629
        %v750 = vmul.f32 %v738, 0.003921569
        %v751 = vmul.f32 %v739, 0.003921569
        %v752 = vmul.f32 %v740, 0.003921569
        %v753 = vmul.f32 %v741, 0.003921569
        %v754 = vmul.f32 %v742, 0.003921569
        %v755 = vmul.f32 %v743, 0.003921569
        %v756 = vpack.c.bf16 %v751, %v750
        %v757 = vpack.c.bf16 %v753, %v752
        %v758 = vpack.c.bf16 %v755, %v754
        %v762 = vunpack.c.l.b16 %v756
        %v763 = vunpack.c.h.b16 %v756
        %v764 = vunpack.c.l.b16 %v757
        %v765 = vunpack.c.h.b16 %v757
        %v766 = vunpack.c.l.b16 %v758
        %v767 = vunpack.c.h.b16 %v758
        %v768 = vpack.c.b16 %v762, %v762
        %v769 = vpack.c.b16 %v763, %v763
        %v770 = vpack.c.b16 %v764, %v764
        %v771 = vpack.c.b16 %v765, %v765
        %v772 = vpack.c.b16 %v766, %v766
        %v773 = vpack.c.b16 %v767, %v767
        %780 = vst [vmem:[%s586] sm:$0xf] %v768
        %781 = vst [vmem:[%s586 + $0x4] sm:$0xf] %v769
        %782 = vst [vmem:[%s586 + $0x8] sm:$0xf] %v770
        %783 = vst [vmem:[%s586 + $0xc] sm:$0xf] %v771
        %784 = vst [vmem:[%s586 + $0x10] sm:$0xf] %v772
        %785 = vst [vmem:[%s586 + $0x14] sm:$0xf] %v773
        %v786 = vmul.f32 %v744, 0.003921569
        %v787 = vmul.f32 %v745, 0.003921569
        %v788 = vmul.f32 %v746, 0.003921569
        %v789 = vmul.f32 %v747, 0.003921569
        %v790 = vmul.f32 %v748, 0.003921569
        %v791 = vmul.f32 %v749, 0.003921569
        %v792 = vpack.c.bf16 %v787, %v786
        %v793 = vpack.c.bf16 %v789, %v788
        %v794 = vpack.c.bf16 %v791, %v790
        %v798 = vunpack.c.l.b16 %v792
        %v799 = vunpack.c.h.b16 %v792
        %v800 = vunpack.c.l.b16 %v793
        %v801 = vunpack.c.h.b16 %v793
        %v802 = vunpack.c.l.b16 %v794
        %v803 = vunpack.c.h.b16 %v794
        %v804 = vpack.c.b16 %v798, %v798
        %v805 = vpack.c.b16 %v799, %v799
        %v806 = vpack.c.b16 %v800, %v800
        %v807 = vpack.c.b16 %v801, %v801
        %v808 = vpack.c.b16 %v802, %v802
        %v809 = vpack.c.b16 %v803, %v803
        %816 = vst [vmem:[%s593] sm:$0xf] %v804
        %817 = vst [vmem:[%s593 + $0x4] sm:$0xf] %v805
        %818 = vst [vmem:[%s593 + $0x8] sm:$0xf] %v806
        %819 = vst [vmem:[%s593 + $0xc] sm:$0xf] %v807
        %820 = vst [vmem:[%s593 + $0x10] sm:$0xf] %v808
        %821 = vst [vmem:[%s593 + $0x14] sm:$0xf] %v809
        %v822 = vmul.f32 %v732, 0.003921569
        %v823 = vmul.f32 %v733, 0.003921569
        %v824 = vmul.f32 %v734, 0.003921569
        %v825 = vmul.f32 %v735, 0.003921569
        %v826 = vmul.f32 %v736, 0.003921569
        %v827 = vmul.f32 %v737, 0.003921569
        %v828 = vpack.c.bf16 %v823, %v822
        %v829 = vpack.c.bf16 %v825, %v824
        %v830 = vpack.c.bf16 %v827, %v826
        %v834 = vunpack.c.l.b16 %v828
        %v835 = vunpack.c.h.b16 %v828
        %v836 = vunpack.c.l.b16 %v829
        %v837 = vunpack.c.h.b16 %v829
        %v838 = vunpack.c.l.b16 %v830
        %v839 = vunpack.c.h.b16 %v830
        %v840 = vpack.c.b16 %v834, %v834
        %v841 = vpack.c.b16 %v835, %v835
        %v842 = vpack.c.b16 %v836, %v836
        %v843 = vpack.c.b16 %v837, %v837
        %v844 = vpack.c.b16 %v838, %v838
        %v845 = vpack.c.b16 %v839, %v839
        %852 = vst [vmem:[%s600] sm:$0xf] %v840
        %853 = vst [vmem:[%s600 + $0x4] sm:$0xf] %v841
        %854 = vst [vmem:[%s600 + $0x8] sm:$0xf] %v842
        %855 = vst [vmem:[%s600 + $0xc] sm:$0xf] %v843
        %856 = vst [vmem:[%s600 + $0x10] sm:$0xf] %v844
        %857 = vst [vmem:[%s600 + $0x14] sm:$0xf] %v845
        %v858 = vmul.f32 %v666, %v628
        %v859 = vmul.f32 %v667, %v629
        %v860 = vmul.f32 %v668, %v628
        %v861 = vmul.f32 %v669, %v629
        %v862 = vmul.f32 %v670, %v628
        %v863 = vmul.f32 %v671, %v629
        %v864 = vmul.f32 %v858, 0.003921569
        %v865 = vmul.f32 %v859, 0.003921569
        %v866 = vmul.f32 %v860, 0.003921569
        %v867 = vmul.f32 %v861, 0.003921569
        %v868 = vmul.f32 %v862, 0.003921569
        %v869 = vmul.f32 %v863, 0.003921569
        %v870 = vpack.c.bf16 %v865, %v864
        %v871 = vpack.c.bf16 %v867, %v866
        %v872 = vpack.c.bf16 %v869, %v868
        %v876 = vunpack.c.l.b16 %v870
        %v877 = vunpack.c.h.b16 %v870
        %v878 = vunpack.c.l.b16 %v871
        %v879 = vunpack.c.h.b16 %v871
        %v880 = vunpack.c.l.b16 %v872
        %v881 = vunpack.c.h.b16 %v872
        %v882 = vpack.c.b16 %v876, %v876
        %v883 = vpack.c.b16 %v877, %v877
        %v884 = vpack.c.b16 %v878, %v878
        %v885 = vpack.c.b16 %v879, %v879
        %v886 = vpack.c.b16 %v880, %v880
        %v887 = vpack.c.b16 %v881, %v881
        %894 = vst [vmem:[%s607] sm:$0xf] %v882
        %895 = vst [vmem:[%s607 + $0x4] sm:$0xf] %v883
        %896 = vst [vmem:[%s607 + $0x8] sm:$0xf] %v884
        %897 = vst [vmem:[%s607 + $0xc] sm:$0xf] %v885
        %898 = vst [vmem:[%s607 + $0x10] sm:$0xf] %v886
        %899 = vst [vmem:[%s607 + $0x14] sm:$0xf] %v887
        %v900 = vsub.f32 %v732, %v858
        %v901 = vsub.f32 %v733, %v859
        %v902 = vsub.f32 %v734, %v860
        %v903 = vsub.f32 %v735, %v861
        %v904 = vsub.f32 %v736, %v862
        %v905 = vsub.f32 %v737, %v863
        %v906 = vmul.f32 %v900, 0.003921569
        %v907 = vmul.f32 %v901, 0.003921569
        %v908 = vmul.f32 %v902, 0.003921569
        %v909 = vmul.f32 %v903, 0.003921569
        %v910 = vmul.f32 %v904, 0.003921569
        %v911 = vmul.f32 %v905, 0.003921569
        %v912 = vand.u32 2147483647, %v906
        %v913 = vand.u32 2147483647, %v907
        %v914 = vand.u32 2147483647, %v908
        %v915 = vand.u32 2147483647, %v909
        %v916 = vand.u32 2147483647, %v910
        %v917 = vand.u32 2147483647, %v911
        %v918 = vadd.f32 %v912, %v913
        %v919 = vadd.f32 %v918, %v914
        %v920 = vadd.f32 %v919, %v915
        %v921 = vadd.f32 %v920, %v916
        %v922 = vadd.f32 %v921, %v917
        %923 = vst [vmem:[%s614] sm:$0xff] %v922
        %s924 = sand.u32 %s177, 1
        %s925 = scalar_lea.sflag [#allocation4], %s924
        %s926 = sand.u32 %s177, 1
        %s927 = smul.addr %s926, 24
        %s928 = scalar_lea.vmem [#allocation11], %s927
        %s929 = sand.u32 %s39, 1
        %s930 = scalar_lea.sflag [#allocation13], %s929
        %s931 = sand.u32 %s203, 1
        %s932 = smul.addr %s931, 24
        %s933 = scalar_lea.vmem [#allocation12], %s932
        %s934 = sand.u32 %s39, 1
        %s935 = scalar_lea.sflag [#allocation13], %s934
        %s936 = sand.u32 %s229, 1
        %s937 = smul.addr %s936, 24
        %s938 = scalar_lea.vmem [#allocation14], %s937
        %s939 = sand.u32 %s39, 1
        %s940 = scalar_lea.sflag [#allocation16], %s939
        %s941 = sand.u32 %s255, 1
        %s942 = smul.addr %s941, 24
        %s943 = scalar_lea.vmem [#allocation15], %s942
        %s944 = sand.u32 %s39, 1
        %s945 = scalar_lea.sflag [#allocation16], %s944
        %s946 = sand.u32 %s281, 1
        %s947 = smul.addr %s946, 8
        %s948 = scalar_lea.vmem [#allocation17], %s947
        // Predicated region
        $region61: #{tpu_custom_call.1} parent=39 // pred_check
          %p949 = pneg %p187
        $region62: #{tpu_custom_call.1} parent=39 // pred_check_branch
          %951 = sbr.rel (%p949) target = $region64
        $region63: #{tpu_custom_call.1} parent=39 // pred_region
          #allocation25 [shape = 'u32[6]{0}', space=smem, size = 0x18, scoped, tag = 'DMA stride descriptor']
          %s952 = smul.u32 2, %s39
          %s954 = ssub.s32 384, 384
          %955 = vsyncadd %s925, %s954
          %s956 = smul.addr %s952, 64
          %s957 = scalar_lea.hbm %s5, %s956
          %s959 = sshll.u32 1, 14
          %s960 = sxor.u32 4294967295, %s959
          %s963 = sshll.u32 7, 18
          %s964 = sxor.u32 4294967295, %s963
          %s965 = sand.u32 0, %s964
          %s967 = sor.u32 %s965, 0
          %s969 = sshll.u32 3, 24
          %s970 = sxor.u32 4294967295, %s969
          %s971 = sand.u32 %s967, %s970
          %s973 = sor.u32 %s971, 0
          %s974 = sshll.u32 %s928, 4
          %s975 = int_to_ptr.vmem [resolvable:$true] %s974
          %981 = sst [smem:[#allocation25]] 128
          %s982 = scalar_lea.smem [#allocation25], 1
          %983 = sst [smem:[%s982]] 256
          %s984 = scalar_lea.smem [#allocation25], 2
          %985 = sst [smem:[%s984]] 2
          %s986 = scalar_lea.smem [#allocation25], 3
          %987 = sst [smem:[%s986]] 64
          %s988 = scalar_lea.smem [#allocation25], 4
          %989 = sst [smem:[%s988]] 64
          %s990 = scalar_lea.smem [#allocation25], 5
          %991 = sst [smem:[%s990]] 4
          %993 = dma.general %s975, 384, %s957, %s925, [#allocation24], [#allocation25], %s973, 0
        $region64: #{tpu_custom_call.1} parent=39 // pred_fallthru
          _
        // Predicated region
        $region65: #{tpu_custom_call.1} parent=39 // pred_check
          %p994 = pneg %p213
        $region66: #{tpu_custom_call.1} parent=39 // pred_check_branch
          %996 = sbr.rel (%p994) target = $region68
        $region67: #{tpu_custom_call.1} parent=39 // pred_region
          #allocation27 [shape = 'u32[6]{0}', space=smem, size = 0x18, scoped, tag = 'DMA stride descriptor']
          %s997 = smul.u32 2, %s39
          %s999 = ssub.s32 384, 384
          %1000 = vsyncadd %s930, %s999
          %s1001 = smul.addr %s997, 64
          %s1002 = scalar_lea.hbm %s6, %s1001
          %s1004 = sshll.u32 1, 14
          %s1005 = sxor.u32 4294967295, %s1004
          %s1008 = sshll.u32 7, 18
          %s1009 = sxor.u32 4294967295, %s1008
          %s1010 = sand.u32 0, %s1009
          %s1012 = sor.u32 %s1010, 0
          %s1014 = sshll.u32 3, 24
          %s1015 = sxor.u32 4294967295, %s1014
          %s1016 = sand.u32 %s1012, %s1015
          %s1018 = sor.u32 %s1016, 0
          %s1019 = sshll.u32 %s933, 4
          %s1020 = int_to_ptr.vmem [resolvable:$true] %s1019
          %1026 = sst [smem:[#allocation27]] 128
          %s1027 = scalar_lea.smem [#allocation27], 1
          %1028 = sst [smem:[%s1027]] 256
          %s1029 = scalar_lea.smem [#allocation27], 2
          %1030 = sst [smem:[%s1029]] 2
          %s1031 = scalar_lea.smem [#allocation27], 3
          %1032 = sst [smem:[%s1031]] 64
          %s1033 = scalar_lea.smem [#allocation27], 4
          %1034 = sst [smem:[%s1033]] 64
          %s1035 = scalar_lea.smem [#allocation27], 5
          %1036 = sst [smem:[%s1035]] 4
          %1038 = dma.general %s1020, 384, %s1002, %s930, [#allocation26], [#allocation27], %s1018, 0
        $region68: #{tpu_custom_call.1} parent=39 // pred_fallthru
          _
        // Predicated region
        $region69: #{tpu_custom_call.1} parent=39 // pred_check
          %p1039 = pneg %p239
        $region70: #{tpu_custom_call.1} parent=39 // pred_check_branch
          %1041 = sbr.rel (%p1039) target = $region72
        $region71: #{tpu_custom_call.1} parent=39 // pred_region
          #allocation29 [shape = 'u32[6]{0}', space=smem, size = 0x18, scoped, tag = 'DMA stride descriptor']
          %s1042 = smul.u32 2, %s39
          %s1044 = ssub.s32 384, 384
          %1045 = vsyncadd %s935, %s1044
          %s1046 = smul.addr %s1042, 64
          %s1047 = scalar_lea.hbm %s7, %s1046
          %s1049 = sshll.u32 1, 14
          %s1050 = sxor.u32 4294967295, %s1049
          %s1053 = sshll.u32 7, 18
          %s1054 = sxor.u32 4294967295, %s1053
          %s1055 = sand.u32 0, %s1054
          %s1057 = sor.u32 %s1055, 0
          %s1059 = sshll.u32 3, 24
          %s1060 = sxor.u32 4294967295, %s1059
          %s1061 = sand.u32 %s1057, %s1060
          %s1063 = sor.u32 %s1061, 0
          %s1064 = sshll.u32 %s938, 4
          %s1065 = int_to_ptr.vmem [resolvable:$true] %s1064
          %1071 = sst [smem:[#allocation29]] 128
          %s1072 = scalar_lea.smem [#allocation29], 1
          %1073 = sst [smem:[%s1072]] 256
          %s1074 = scalar_lea.smem [#allocation29], 2
          %1075 = sst [smem:[%s1074]] 2
          %s1076 = scalar_lea.smem [#allocation29], 3
          %1077 = sst [smem:[%s1076]] 64
          %s1078 = scalar_lea.smem [#allocation29], 4
          %1079 = sst [smem:[%s1078]] 64
          %s1080 = scalar_lea.smem [#allocation29], 5
          %1081 = sst [smem:[%s1080]] 4
          %1083 = dma.general %s1065, 384, %s1047, %s935, [#allocation28], [#allocation29], %s1063, 0
        $region72: #{tpu_custom_call.1} parent=39 // pred_fallthru
          _
        // Predicated region
        $region73: #{tpu_custom_call.1} parent=39 // pred_check
          %p1084 = pneg %p265
        $region74: #{tpu_custom_call.1} parent=39 // pred_check_branch
          %1086 = sbr.rel (%p1084) target = $region76
        $region75: #{tpu_custom_call.1} parent=39 // pred_region
          #allocation31 [shape = 'u32[6]{0}', space=smem, size = 0x18, scoped, tag = 'DMA stride descriptor']
          %s1087 = smul.u32 2, %s39
          %s1089 = ssub.s32 384, 384
          %1090 = vsyncadd %s940, %s1089
          %s1091 = smul.addr %s1087, 64
          %s1092 = scalar_lea.hbm %s8, %s1091
          %s1094 = sshll.u32 1, 14
          %s1095 = sxor.u32 4294967295, %s1094
          %s1098 = sshll.u32 7, 18
          %s1099 = sxor.u32 4294967295, %s1098
          %s1100 = sand.u32 0, %s1099
          %s1102 = sor.u32 %s1100, 0
          %s1104 = sshll.u32 3, 24
          %s1105 = sxor.u32 4294967295, %s1104
          %s1106 = sand.u32 %s1102, %s1105
          %s1108 = sor.u32 %s1106, 0
          %s1109 = sshll.u32 %s943, 4
          %s1110 = int_to_ptr.vmem [resolvable:$true] %s1109
          %1116 = sst [smem:[#allocation31]] 128
          %s1117 = scalar_lea.smem [#allocation31], 1
          %1118 = sst [smem:[%s1117]] 256
          %s1119 = scalar_lea.smem [#allocation31], 2
          %1120 = sst [smem:[%s1119]] 2
          %s1121 = scalar_lea.smem [#allocation31], 3
          %1122 = sst [smem:[%s1121]] 64
          %s1123 = scalar_lea.smem [#allocation31], 4
          %1124 = sst [smem:[%s1123]] 64
          %s1125 = scalar_lea.smem [#allocation31], 5
          %1126 = sst [smem:[%s1125]] 4
          %1128 = dma.general %s1110, 384, %s1092, %s940, [#allocation30], [#allocation31], %s1108, 0
        $region76: #{tpu_custom_call.1} parent=39 // pred_fallthru
          _
        // Predicated region
        $region77: #{tpu_custom_call.1} parent=39 // pred_check
          %p1129 = pneg %p291
        $region78: #{tpu_custom_call.1} parent=39 // pred_check_branch
          %1131 = sbr.rel (%p1129) target = $region80
        $region79: #{tpu_custom_call.1} parent=39 // pred_region
          %s1133 = ssub.s32 128, 128
          %1134 = vsyncadd %s945, %s1133
          %s1135 = smul.addr %s39, 128
          %s1136 = scalar_lea.hbm %s9, %s1135
          %s1138 = sshll.u32 %s948, 4
          %s1139 = int_to_ptr.vmem [resolvable:$true] %s1138
          %1141 = dma.vmem_to_hbm [thread:$0]  %s1139, 128, %s1136, %s945
        $region80: #{tpu_custom_call.1} parent=39 // pred_fallthru
          _
      $region40: #{tpu_custom_call.1} parent=5 // pred_fallthru
        _
      %p1142 = scmp.le.s32.totalorder 2, %s34
      // Predicated region
      $region81: #{tpu_custom_call.1} parent=5 // pred_check
        %p1143 = pneg %p1142
      $region82: #{tpu_custom_call.1} parent=5 // pred_check_branch
        %1145 = sbr.rel (%p1143) target = $region84
      $region83: #{tpu_custom_call.1} parent=5 // pred_region
        %s1146 = ssub.s32 %s34, 2
        // Predicated region
        $region85: #{tpu_custom_call.1} parent=83 // pred_check
          %p1147 = pneg %p193
        $region86: #{tpu_custom_call.1} parent=83 // pred_check_branch
          %1149 = sbr.rel (%p1147) target = $region88
        $region87: #{tpu_custom_call.1} parent=83 // pred_region
          %s1150 = sand.u32 %s178, 1
          %s1151 = scalar_lea.sflag [#allocation4], %s1150
          %s1152 = sand.u32 %s178, 1
          %s1153 = smul.addr %s1152, 24
          %s1154 = scalar_lea.vmem [#allocation11], %s1153
          %1155 = dma.done %s1151, 384
        $region88: #{tpu_custom_call.1} parent=83 // pred_fallthru
          _
        // Predicated region
        $region89: #{tpu_custom_call.1} parent=83 // pred_check
          %p1156 = pneg %p219
        $region90: #{tpu_custom_call.1} parent=83 // pred_check_branch
          %1158 = sbr.rel (%p1156) target = $region92
        $region91: #{tpu_custom_call.1} parent=83 // pred_region
          %s1159 = sand.u32 %s40, 1
          %s1160 = scalar_lea.sflag [#allocation13], %s1159
          %s1161 = sand.u32 %s204, 1
          %s1162 = smul.addr %s1161, 24
          %s1163 = scalar_lea.vmem [#allocation12], %s1162
          %1164 = dma.done %s1160, 384
        $region92: #{tpu_custom_call.1} parent=83 // pred_fallthru
          _
        // Predicated region
        $region93: #{tpu_custom_call.1} parent=83 // pred_check
          %p1165 = pneg %p245
        $region94: #{tpu_custom_call.1} parent=83 // pred_check_branch
          %1167 = sbr.rel (%p1165) target = $region96
        $region95: #{tpu_custom_call.1} parent=83 // pred_region
          %s1168 = sand.u32 %s40, 1
          %s1169 = scalar_lea.sflag [#allocation13], %s1168
          %s1170 = sand.u32 %s230, 1
          %s1171 = smul.addr %s1170, 24
          %s1172 = scalar_lea.vmem [#allocation14], %s1171
          %1173 = dma.done %s1169, 384
        $region96: #{tpu_custom_call.1} parent=83 // pred_fallthru
          _
        // Predicated region
        $region97: #{tpu_custom_call.1} parent=83 // pred_check
          %p1174 = pneg %p271
        $region98: #{tpu_custom_call.1} parent=83 // pred_check_branch
          %1176 = sbr.rel (%p1174) target = $region100
        $region99: #{tpu_custom_call.1} parent=83 // pred_region
          %s1177 = sand.u32 %s40, 1
          %s1178 = scalar_lea.sflag [#allocation16], %s1177
          %s1179 = sand.u32 %s256, 1
          %s1180 = smul.addr %s1179, 24
          %s1181 = scalar_lea.vmem [#allocation15], %s1180
          %1182 = dma.done %s1178, 384
        $region100: #{tpu_custom_call.1} parent=83 // pred_fallthru
          _
        // Predicated region
        $region101: #{tpu_custom_call.1} parent=83 // pred_check
          %p1183 = pneg %p297
        $region102: #{tpu_custom_call.1} parent=83 // pred_check_branch
          %1185 = sbr.rel (%p1183) target = $region104
        $region103: #{tpu_custom_call.1} parent=83 // pred_region
          %s1186 = sand.u32 %s40, 1
          %s1187 = scalar_lea.sflag [#allocation16], %s1186
          %s1188 = sand.u32 %s282, 1
          %s1189 = smul.addr %s1188, 8
          %s1190 = scalar_lea.vmem [#allocation17], %s1189
          %1191 = dma.done %s1187, 128
        $region104: #{tpu_custom_call.1} parent=83 // pred_fallthru
          _
      $region84: #{tpu_custom_call.1} parent=5 // pred_fallthru
        _
    $region6: #{tpu_custom_call.1} parent=1 // loop_footer
      %s38 = sadd.s32 1, %s34
    $region7: #{tpu_custom_call.1} parent=1 // loop_footer_branch
      %33 = sbr.rel target = $region3
    $region8: #{tpu_custom_call.1} parent=1 // loop_exit
      _
    %1192 = vsyncpa [#allocation3], 1
    %s1193 = scalar_lea.sflag [#allocation3], 1
    %1194 = vsyncpa %s1193, 1
    %1195 = vsyncpa [#allocation6], 1
    %s1196 = scalar_lea.sflag [#allocation6], 1
    %1197 = vsyncpa %s1196, 1
    %1198 = vsyncpa [#allocation9], 1
    %s1199 = scalar_lea.sflag [#allocation9], 1
    %1200 = vsyncpa %s1199, 1
    %1201 = vsyncpa [#allocation4], 1
    %s1202 = scalar_lea.sflag [#allocation4], 1
    %1203 = vsyncpa %s1202, 1
    %1204 = vsyncpa [#allocation13], 1
    %s1205 = scalar_lea.sflag [#allocation13], 1
    %1206 = vsyncpa %s1205, 1
    %1207 = vsyncpa [#allocation16], 1
    %s1208 = scalar_lea.sflag [#allocation16], 1
    %1209 = vsyncpa %s1208, 1

</llo_original>
